<compile_context>
chip_gen: v7x
topology: tpu7x:2x2x1
jax: 0.10.0
libtpu: 0.0.40
codegen_flags: <defaults>
</compile_context>

<pallas_src>
import functools

import jax
import jax.numpy as jnp
from jax.experimental import pallas as pl
from jax.experimental.pallas import tpu as pltpu

PACK = 16          # samples packed per 128-lane vector (16 * 8 features = 128 lanes)
TB_MAX = 32768     # max samples per grid tile (multiple of 128)


def _mlp_kernel(w1_ref, b1_ref, w2_ref, b2_ref, w3_ref, b3_ref, x_ref, o_ref):
    # x_ref: (tb/16, 128) tile; lanes [8*i : 8*i+8] of a row are sample i's 8 features.
    # All weights are block-diagonal replications, so every dot is lane-dense on the MXU.

    # Layer 1: Linear(8 -> 32) + ReLU        -> (tb/16, 512)
    h1 = jnp.dot(x_ref[...], w1_ref[...], preferred_element_type=jnp.float32)
    h1 = jnp.maximum(h1 + b1_ref[...], 0.0)

    # Layer 2: Linear(32 -> 16) + ReLU       -> (tb/16, 256)
    h2 = jnp.dot(h1.astype(w2_ref.dtype), w2_ref[...],
                 preferred_element_type=jnp.float32)
    h2 = jnp.maximum(h2 + b2_ref[...], 0.0)

    # Layer 3: Linear(16 -> 1) + Sigmoid     -> (tb/16, 16)  (== contiguous (tb, 1))
    h3 = jnp.dot(h2.astype(w3_ref.dtype), w3_ref[...],
                 preferred_element_type=jnp.float32)
    o_ref[...] = jax.nn.sigmoid(h3 + b3_ref[...]).astype(o_ref.dtype)


def _block_diag(w):
    """PyTorch-layout w (out, in) -> (PACK*in, PACK*out) block-diagonal of w.T blocks."""
    out_f, in_f = w.shape
    eye = jnp.eye(PACK, dtype=w.dtype)
    blk = jnp.einsum("ij,fo->ifjo", eye, w.T)          # (PACK, in, PACK, out)
    return blk.reshape(PACK * in_f, PACK * out_f)


def _tile_bias(b):
    """b (out,) or (out, 1) -> (1, PACK*out), matching the packed lane layout."""
    return jnp.tile(b.reshape(-1), PACK).reshape(1, -1)


@functools.partial(jax.jit, static_argnames=("tb", "use_bf16"))
def fusion_predictor(x, params, *, tb=None, use_bf16=False):
    """x: (B, 8) float32.  params: PyTorch-layout weights.  Returns (B, 1) float32."""
    w1, b1 = params["w1"], params["b1"]   # (32, 8),  (32, 1)
    w2, b2 = params["w2"], params["b2"]   # (16, 32), (16, 1)
    w3, b3 = params["w3"], params["b3"]   # (1, 16),  (1, 1)

    B = x.shape[0]
    b_ceil = max(128, pl.cdiv(B, 128) * 128)       # minimum aligned (padded) batch

    # Tile policy: big tiles (amortise ~0.35us/step grid overhead), but >=2 tiles when
    # possible so v7x's second TensorCore is used; cap at TB_MAX for VMEM headroom.
    if tb is None:
        if b_ceil <= 2 * TB_MAX:
            tb = max(128, pl.cdiv(b_ceil, 2 * 128) * 128)
        else:
            tb = TB_MAX
    tb = max(128, min((tb // 128) * 128, TB_MAX))   # multiple of 128, capped
    n_tiles = pl.cdiv(b_ceil, tb)
    b_pad = n_tiles * tb

    compute_dtype = jnp.bfloat16 if use_bf16 else x.dtype

    # Interleaved repack: row-major (b_pad, 8) == (b_pad/16, 128). No transpose; the pad
    # is skipped entirely when B is already aligned, so no extra HBM pass over x.
    x_p = x if b_pad == B else jnp.pad(x, ((0, b_pad - B), (0, 0)))
    x_packed = x_p.reshape(b_pad // PACK, 8 * PACK).astype(compute_dtype)

    # Block-diagonally replicated weights (tiny; stay resident in VMEM across the grid).
    w1_blk = _block_diag(w1).astype(compute_dtype)   # (128, 512)
    w2_blk = _block_diag(w2).astype(compute_dtype)   # (512, 256)
    w3_blk = _block_diag(w3).astype(compute_dtype)   # (256, 16)
    b1_t = _tile_bias(b1)                            # (1, 512) f32
    b2_t = _tile_bias(b2)                            # (1, 256) f32
    b3_t = _tile_bias(b3)                            # (1, 16)  f32

    rows_per_tile = tb // PACK                       # multiple of 8

    def const_spec(shape):
        return pl.BlockSpec(shape, lambda i: (0, 0))

    in_bytes = 2 if use_bf16 else 4
    weight_bytes = in_bytes * (128 * 512 + 512 * 256 + 256 * 16) + 4 * (512 + 256 + 16)
    cost = pl.CostEstimate(
        flops=2 * b_pad * (8 * 32 + 32 * 16 + 16 * 1),
        transcendentals=b_pad,
        bytes_accessed=b_pad * (8 * in_bytes + 4) + weight_bytes,
    )

    out_packed = pl.pallas_call(
        _mlp_kernel,
        out_shape=jax.ShapeDtypeStruct((b_pad // PACK, PACK), jnp.float32),
        grid=(n_tiles,),
        in_specs=[
            const_spec((128, 512)),   # w1_blk
            const_spec((1, 512)),     # b1
            const_spec((512, 256)),   # w2_blk
            const_spec((1, 256)),     # b2
            const_spec((256, 16)),    # w3_blk
            const_spec((1, 16)),      # b3
            pl.BlockSpec((rows_per_tile, 128), lambda i: (i, 0)),   # packed x, streamed
        ],
        out_specs=pl.BlockSpec((rows_per_tile, PACK), lambda i: (i, 0)),
        compiler_params=pltpu.CompilerParams(
            dimension_semantics=("parallel",),        # shard batch tiles across TCs
            vmem_limit_bytes=32 * 1024 * 1024,        # safe on v5e/v6e/v7x for tb<=32768
        ),
        cost_estimate=cost,
    )(w1_blk, b1_t, w2_blk, b2_t, w3_blk, b3_t, x_packed)

    # (b_pad/16, 16) row-major is exactly samples 0..b_pad-1 in order.
    return out_packed.reshape(-1)[:B].reshape(B, 1)


def init_params(key):
    """Deterministic init matching nn.Linear: W (out, in), b (out, 1)."""
    ks = jax.random.split(key, 6)

    def linear_init(kw, kb, fan_in, fan_out):
        bound = 1.0 / jnp.sqrt(jnp.float32(fan_in))
        w = jax.random.uniform(kw, (fan_out, fan_in), jnp.float32, -bound, bound)
        b = jax.random.uniform(kb, (fan_out, 1), jnp.float32, -bound, bound)
        return w, b

    w1, b1 = linear_init(ks[0], ks[1], 8, 32)
    w2, b2 = linear_init(ks[2], ks[3], 32, 16)
    w3, b3 = linear_init(ks[4], ks[5], 16, 1)
    return {"w1": w1, "b1": b1, "w2": w2, "b2": b2, "w3": w3, "b3": b3}


def _reference(x, p):
    # Pure-JAX reference in the standard (batch, feature) layout.
    h1 = jnp.maximum(x @ p["w1"].T + p["b1"].T, 0.0)
    h2 = jnp.maximum(h1 @ p["w2"].T + p["b2"].T, 0.0)
    return jax.nn.sigmoid(h2 @ p["w3"].T + p["b3"].T)


if __name__ == "__main__":
    key = jax.random.PRNGKey(0)
    k_param, k_x = jax.random.split(key)
    params = init_params(k_param)

    # Small batch, single tile.
    batch = 8
    x = jax.random.normal(k_x, (batch, 8), dtype=jnp.float32)
    out = jax.block_until_ready(fusion_predictor(x, params))
    ref = _reference(x, params)
    assert out.shape == (batch, 1), out.shape
    assert jnp.allclose(out, ref, atol=1e-5, rtol=1e-5)

    # Ragged batch across multiple grid tiles (padded last tile).
    batch2 = 300
    x2 = jax.random.normal(jax.random.PRNGKey(1), (batch2, 8), dtype=jnp.float32)
    out2 = jax.block_until_ready(fusion_predictor(x2, params, tb=128))
    ref2 = _reference(x2, params)
    assert out2.shape == (batch2, 1)
    assert jnp.allclose(out2, ref2, atol=1e-5, rtol=1e-5)

    # Auto tile policy (2 tiles) + optional bf16 compute path (looser tolerance).
    out3 = jax.block_until_ready(fusion_predictor(x2, params, use_bf16=True))
    assert out3.shape == (batch2, 1)
    assert jnp.allclose(out3, ref2, atol=1e-2)

    print("KERNEL_OK")
</pallas_src>

<mosaic_0001>
module attributes {stable_mosaic.version = 11 : i64} {
  func.func @_mlp_kernel(%arg0: i32, %arg1: memref<128x512xf32, #tpu.memory_space<vmem>>, %arg2: memref<1x512xf32, #tpu.memory_space<vmem>>, %arg3: memref<512x256xf32, #tpu.memory_space<vmem>>, %arg4: memref<1x256xf32, #tpu.memory_space<vmem>>, %arg5: memref<256x16xf32, #tpu.memory_space<vmem>>, %arg6: memref<1x16xf32, #tpu.memory_space<vmem>>, %arg7: memref<8x128xf32, #tpu.memory_space<vmem>>, %arg8: memref<8x16xf32, #tpu.memory_space<vmem>>) attributes {dimension_semantics = [#tpu.dimension_semantics<parallel>], iteration_bounds = array<i64: 1>, scalar_prefetch = 0 : i64, scratch_operands = 0 : i64, tpu.core_type = #tpu.core_type<tc>, window_params = [{pipeline_mode = #tpu.pipeline_mode<synchronous>, transform_indices = @transform_0, window_bounds = array<i64: 128, 512>}, {pipeline_mode = #tpu.pipeline_mode<synchronous>, transform_indices = @transform_1, window_bounds = array<i64: 1, 512>}, {pipeline_mode = #tpu.pipeline_mode<synchronous>, transform_indices = @transform_2, window_bounds = array<i64: 512, 256>}, {pipeline_mode = #tpu.pipeline_mode<synchronous>, transform_indices = @transform_3, window_bounds = array<i64: 1, 256>}, {pipeline_mode = #tpu.pipeline_mode<synchronous>, transform_indices = @transform_4, window_bounds = array<i64: 256, 16>}, {pipeline_mode = #tpu.pipeline_mode<synchronous>, transform_indices = @transform_5, window_bounds = array<i64: 1, 16>}, {transform_indices = @transform_6, window_bounds = array<i64: 8, 128>}, {transform_indices = @transform_7, window_bounds = array<i64: 8, 16>}]} {
    %c0 = arith.constant 0 : index
    %c0_0 = arith.constant 0 : index
    %0 = vector.load %arg7[%c0, %c0_0] : memref<8x128xf32, #tpu.memory_space<vmem>>, vector<8x128xf32>
    %c0_1 = arith.constant 0 : index
    %c0_2 = arith.constant 0 : index
    %1 = vector.load %arg1[%c0_1, %c0_2] : memref<128x512xf32, #tpu.memory_space<vmem>>, vector<128x512xf32>
    %cst = arith.constant dense<0.000000e+00> : vector<8x512xf32>
    %2 = tpu.matmul %0, %1, %cst {dimension_numbers = #tpu.dot_dimension_numbers<[1], [0], [0], [1], [0, 0, 1, 1], [], []>} : vector<8x128xf32>, vector<128x512xf32>, vector<8x512xf32> -> vector<8x512xf32>
    %c0_3 = arith.constant 0 : index
    %c0_4 = arith.constant 0 : index
    %3 = vector.load %arg2[%c0_3, %c0_4] : memref<1x512xf32, #tpu.memory_space<vmem>>, vector<1x512xf32>
    %4 = vector.broadcast %3 : vector<1x512xf32> to vector<8x512xf32>
    %5 = arith.addf %2, %4 : vector<8x512xf32>
    %cst_5 = arith.constant 0.000000e+00 : f32
    %6 = vector.broadcast %cst_5 : f32 to vector<8x512xf32>
    %7 = arith.maximumf %5, %6 : vector<8x512xf32>
    %c0_6 = arith.constant 0 : index
    %c0_7 = arith.constant 0 : index
    %8 = vector.load %arg3[%c0_6, %c0_7] : memref<512x256xf32, #tpu.memory_space<vmem>>, vector<512x256xf32>
    %cst_8 = arith.constant dense<0.000000e+00> : vector<8x256xf32>
    %9 = tpu.matmul %7, %8, %cst_8 {dimension_numbers = #tpu.dot_dimension_numbers<[1], [0], [0], [1], [0, 0, 1, 1], [], []>} : vector<8x512xf32>, vector<512x256xf32>, vector<8x256xf32> -> vector<8x256xf32>
    %c0_9 = arith.constant 0 : index
    %c0_10 = arith.constant 0 : index
    %10 = vector.load %arg4[%c0_9, %c0_10] : memref<1x256xf32, #tpu.memory_space<vmem>>, vector<1x256xf32>
    %11 = vector.broadcast %10 : vector<1x256xf32> to vector<8x256xf32>
    %12 = arith.addf %9, %11 : vector<8x256xf32>
    %cst_11 = arith.constant 0.000000e+00 : f32
    %13 = vector.broadcast %cst_11 : f32 to vector<8x256xf32>
    %14 = arith.maximumf %12, %13 : vector<8x256xf32>
    %c0_12 = arith.constant 0 : index
    %c0_13 = arith.constant 0 : index
    %15 = vector.load %arg5[%c0_12, %c0_13] : memref<256x16xf32, #tpu.memory_space<vmem>>, vector<256x16xf32>
    %cst_14 = arith.constant dense<0.000000e+00> : vector<8x16xf32>
    %16 = tpu.matmul %14, %15, %cst_14 {dimension_numbers = #tpu.dot_dimension_numbers<[1], [0], [0], [1], [0, 0, 1, 1], [], []>} : vector<8x256xf32>, vector<256x16xf32>, vector<8x16xf32> -> vector<8x16xf32>
    %c0_15 = arith.constant 0 : index
    %c0_16 = arith.constant 0 : index
    %17 = vector.load %arg6[%c0_15, %c0_16] : memref<1x16xf32, #tpu.memory_space<vmem>>, vector<1x16xf32>
    %18 = vector.broadcast %17 : vector<1x16xf32> to vector<8x16xf32>
    %19 = arith.addf %16, %18 : vector<8x16xf32>
    %20 = arith.negf %19 : vector<8x16xf32>
    %21 = math.exp %20 : vector<8x16xf32>
    %cst_17 = arith.constant 1.000000e+00 : f32
    %22 = vector.broadcast %cst_17 : f32 to vector<8x16xf32>
    %23 = arith.addf %22, %21 : vector<8x16xf32>
    %24 = arith.divf %22, %23 : vector<8x16xf32>
    %c0_18 = arith.constant 0 : index
    %c0_19 = arith.constant 0 : index
    %25 = vector.load %arg8[%c0_18, %c0_19] : memref<8x16xf32, #tpu.memory_space<vmem>>, vector<8x16xf32>
    tpu.vector_store %arg8[%c0_18, %c0_19], %24 {strides = array<i32>} : memref<8x16xf32, #tpu.memory_space<vmem>>, vector<8x16xf32>,
    return
  }
  func.func @transform_0(%arg0: i32) -> (i32, i32) {
    %c0_i32 = arith.constant 0 : i32
    %c0_i32_0 = arith.constant 0 : i32
    %c0_i32_1 = arith.constant 0 : i32
    return %c0_i32, %c0_i32_0 : i32, i32
  }
  func.func @transform_1(%arg0: i32) -> (i32, i32) {
    %c0_i32 = arith.constant 0 : i32
    %c0_i32_0 = arith.constant 0 : i32
    %c0_i32_1 = arith.constant 0 : i32
    return %c0_i32, %c0_i32_0 : i32, i32
  }
  func.func @transform_2(%arg0: i32) -> (i32, i32) {
    %c0_i32 = arith.constant 0 : i32
    %c0_i32_0 = arith.constant 0 : i32
    %c0_i32_1 = arith.constant 0 : i32
    return %c0_i32, %c0_i32_0 : i32, i32
  }
  func.func @transform_3(%arg0: i32) -> (i32, i32) {
    %c0_i32 = arith.constant 0 : i32
    %c0_i32_0 = arith.constant 0 : i32
    %c0_i32_1 = arith.constant 0 : i32
    return %c0_i32, %c0_i32_0 : i32, i32
  }
  func.func @transform_4(%arg0: i32) -> (i32, i32) {
    %c0_i32 = arith.constant 0 : i32
    %c0_i32_0 = arith.constant 0 : i32
    %c0_i32_1 = arith.constant 0 : i32
    return %c0_i32, %c0_i32_0 : i32, i32
  }
  func.func @transform_5(%arg0: i32) -> (i32, i32) {
    %c0_i32 = arith.constant 0 : i32
    %c0_i32_0 = arith.constant 0 : i32
    %c0_i32_1 = arith.constant 0 : i32
    return %c0_i32, %c0_i32_0 : i32, i32
  }
  func.func @transform_6(%arg0: i32) -> (i32, i32) {
    %c0_i32 = arith.constant 0 : i32
    %c0_i32_0 = arith.constant 0 : i32
    return %arg0, %c0_i32 : i32, i32
  }
  func.func @transform_7(%arg0: i32) -> (i32, i32) {
    %c0_i32 = arith.constant 0 : i32
    %c0_i32_0 = arith.constant 0 : i32
    return %arg0, %c0_i32 : i32, i32
  }
}

</mosaic_0001>

<llo_original>
// kernel: tile.14
$region0: #{tile.14}
  #allocation0 [shape = 's32[1]{0}', space=sflag, size = 0x4, scoped, tag = 'scoped memory for tile.14']
  %s0 = inlined_call_operand.vmem [shape: f32[32], index: 0, kind: input, shape index: {}]
  %s1 = inlined_call_operand.vmem [shape: f32[16,32], index: 1, kind: output, shape index: {}]
  // Predicated region
  $region2: #{tile.14} parent=0 // pred_check
    _
  $region3: #{tile.14} parent=0 // pred_check_branch
    %3 = sbr.rel (0) target = $region5
  $region4: #{tile.14} parent=0 // pred_region
    _
  $region5: #{tile.14} parent=0 // pred_fallthru
    _
  %v4 = vld [vmem:[%s0] ss:$0 sm:$0xff]
  %5 = vst [vmem:[%s1] sm:$0xff] %v4
  %s6 = scalar_lea.vmem %s1, 8
  %7 = vst [vmem:[%s6] sm:$0xff] %v4

// kernel: tile.15
$region0: #{tile.15}
  %s0 = inlined_call_operand.vmem [shape: f32[16,32], index: 0, kind: input, shape index: {}]
  %s1 = inlined_call_operand.vmem [shape: f32[1,512], index: 1, kind: output, shape index: {}]
  $region1: #{tile.15} parent=0
    #allocation0 [shape = 'u8[16384]{0}', space=vmem, size = 0x4000, scoped, tag = 'scoped mem for output reshape']
    %v2 = vld [vmem:[%s0] ss:$4 sm:$0xf]
    %vm3 = vcmask 261120
    %4 = vst.msk [vmem:[#allocation0] ss:$8 sm:$0xf] %vm3, %v2
    %s5 = scalar_lea.vmem %s0, 3
    %v6 = vld [vmem:[%s5] ss:$4 sm:$0xf]
    %7 = vrot.lane.b32.xlu0 %v6, 96
    %v8 = vpop.permute.xlu0 %7
    %vm9 = vcmask 1048320
    %10 = vst.msk [vmem:[#allocation0] ss:$8 sm:$0xf] %vm9, %v8
    %s11 = scalar_lea.vmem %s0, 2
    %v12 = vld [vmem:[%s11] ss:$4 sm:$0xf]
    %13 = vrot.lane.b32.xlu0 %v12, 64
    %v14 = vpop.permute.xlu0 %13
    %vm15 = vcmask 785920
    %16 = vst.msk [vmem:[#allocation0] ss:$8 sm:$0xf] %vm15, %v14
    %s17 = scalar_lea.vmem %s0, 1
    %v18 = vld [vmem:[%s17] ss:$4 sm:$0xf]
    %19 = vrot.lane.b32.xlu0 %v18, 32
    %v20 = vpop.permute.xlu0 %19
    %vm21 = vcmask 523520
    %22 = vst.msk [vmem:[#allocation0] ss:$8 sm:$0xf] %vm21, %v20
    %s24 = sshllo.u32 0, 1
    %v26 = vld [vmem:[#allocation0] sm:%s24]
    %s27 = sshllo.u32 0, 1
    %28 = vst [vmem:[%s1] sm:%s27] %v26
    %s29 = scalar_lea.vmem [#allocation0], 8
    %v30 = vld [vmem:[%s29] sm:%s24]
    %s31 = sshllo.u32 0, 1
    %s32 = scalar_lea.vmem %s1, 1
    %33 = vst [vmem:[%s32] sm:%s31] %v30
    %s34 = scalar_lea.vmem [#allocation0], 16
    %v35 = vld [vmem:[%s34] sm:%s24]
    %s36 = sshllo.u32 0, 1
    %s37 = smul.addr 1, 2
    %s38 = scalar_lea.vmem %s1, %s37
    %39 = vst [vmem:[%s38] sm:%s36] %v35
    %s40 = scalar_lea.vmem [#allocation0], 24
    %v41 = vld [vmem:[%s40] sm:%s24]
    %s42 = sshllo.u32 0, 1
    %s43 = smul.addr 1, 3
    %s44 = scalar_lea.vmem %s1, %s43
    %45 = vst [vmem:[%s44] sm:%s42] %v41

// kernel: tile.18
$region0: #{tile.18}
  #allocation0 [shape = 's32[1]{0}', space=sflag, size = 0x4, scoped, tag = 'scoped memory for tile.18']
  %s0 = inlined_call_operand.vmem [shape: f32[16], index: 0, kind: input, shape index: {}]
  %s1 = inlined_call_operand.vmem [shape: f32[16,16], index: 1, kind: output, shape index: {}]
  // Predicated region
  $region2: #{tile.18} parent=0 // pred_check
    _
  $region3: #{tile.18} parent=0 // pred_check_branch
    %3 = sbr.rel (0) target = $region5
  $region4: #{tile.18} parent=0 // pred_region
    _
  $region5: #{tile.18} parent=0 // pred_fallthru
    _
  %v4 = vld [vmem:[%s0] ss:$0 sm:$0xff]
  %5 = vst [vmem:[%s1] sm:$0xff] %v4
  %s6 = scalar_lea.vmem %s1, 8
  %7 = vst [vmem:[%s6] sm:$0xff] %v4

// kernel: tile.19
$region0: #{tile.19}
  %s0 = inlined_call_operand.vmem [shape: f32[16,16], index: 0, kind: input, shape index: {}]
  %s1 = inlined_call_operand.vmem [shape: f32[1,256], index: 1, kind: output, shape index: {}]
  $region1: #{tile.19} parent=0
    #allocation0 [shape = 'u8[8192]{0}', space=vmem, size = 0x2000, scoped, tag = 'scoped mem for output reshape']
    %s2 = smov 3
    %v3 = vld [vmem:[%s0] ss:$8 sm:%s2]
    %vm4 = vcmask 130048
    %5 = vst.msk [vmem:[#allocation0] ss:$8 sm:$0x3] %vm4, %v3
    %s6 = scalar_lea.vmem %s0, 7
    %s7 = smov 3
    %v8 = vld [vmem:[%s6] ss:$8 sm:%s7]
    %9 = vrot.lane.b32.xlu0 %v8, 112
    %v10 = vpop.permute.xlu0 %9
    %vm11 = vcmask 1048448
    %12 = vst.msk [vmem:[#allocation0] ss:$8 sm:$0x3] %vm11, %v10
    %s13 = scalar_lea.vmem %s0, 6
    %s14 = smov 3
    %v15 = vld [vmem:[%s13] ss:$8 sm:%s14]
    %16 = vrot.lane.b32.xlu0 %v15, 96
    %v17 = vpop.permute.xlu0 %16
    %vm18 = vcmask 917248
    %19 = vst.msk [vmem:[#allocation0] ss:$8 sm:$0x3] %vm18, %v17
    %s20 = scalar_lea.vmem %s0, 5
    %s21 = smov 3
    %v22 = vld [vmem:[%s20] ss:$8 sm:%s21]
    %23 = vrot.lane.b32.xlu0 %v22, 80
    %v24 = vpop.permute.xlu0 %23
    %vm25 = vcmask 786048
    %26 = vst.msk [vmem:[#allocation0] ss:$8 sm:$0x3] %vm25, %v24
    %s27 = scalar_lea.vmem %s0, 4
    %s28 = smov 3
    %v29 = vld [vmem:[%s27] ss:$8 sm:%s28]
    %30 = vrot.lane.b32.xlu0 %v29, 64
    %v31 = vpop.permute.xlu0 %30
    %vm32 = vcmask 654848
    %33 = vst.msk [vmem:[#allocation0] ss:$8 sm:$0x3] %vm32, %v31
    %s34 = scalar_lea.vmem %s0, 3
    %s35 = smov 3
    %v36 = vld [vmem:[%s34] ss:$8 sm:%s35]
    %37 = vrot.lane.b32.xlu0 %v36, 48
    %v38 = vpop.permute.xlu0 %37
    %vm39 = vcmask 523648
    %40 = vst.msk [vmem:[#allocation0] ss:$8 sm:$0x3] %vm39, %v38
    %s41 = scalar_lea.vmem %s0, 2
    %s42 = smov 3
    %v43 = vld [vmem:[%s41] ss:$8 sm:%s42]
    %44 = vrot.lane.b32.xlu0 %v43, 32
    %v45 = vpop.permute.xlu0 %44
    %vm46 = vcmask 392448
    %47 = vst.msk [vmem:[#allocation0] ss:$8 sm:$0x3] %vm46, %v45
    %s48 = scalar_lea.vmem %s0, 1
    %s49 = smov 3
    %v50 = vld [vmem:[%s48] ss:$8 sm:%s49]
    %51 = vrot.lane.b32.xlu0 %v50, 16
    %v52 = vpop.permute.xlu0 %51
    %vm53 = vcmask 261248
    %54 = vst.msk [vmem:[#allocation0] ss:$8 sm:$0x3] %vm53, %v52
    %s56 = sshllo.u32 0, 1
    %v58 = vld [vmem:[#allocation0] sm:%s56]
    %s59 = sshllo.u32 0, 1
    %60 = vst [vmem:[%s1] sm:%s59] %v58
    %s61 = scalar_lea.vmem [#allocation0], 8
    %v62 = vld [vmem:[%s61] sm:%s56]
    %s63 = sshllo.u32 0, 1
    %s64 = scalar_lea.vmem %s1, 1
    %65 = vst [vmem:[%s64] sm:%s63] %v62

</llo_original>
